<compile_context>
chip_gen: v7x
topology: tpu7x:2x2x1
jax: 0.10.0
libtpu: 0.0.40
codegen_flags: <defaults>
</compile_context>

<pallas_src>
import functools

import jax
import jax.numpy as jnp
from jax.experimental import pallas as pl
from jax.experimental.pallas import tpu as pltpu

HIDDEN = 64
FUSED = 2 * HIDDEN          # 128: actor|critic hidden lanes fused -> one vreg lane width
OUT_W = FUSED               # lane-dense output slab width
_BIAS_ROWS = 24             # 3 bias rows, each at its own 8-row (sublane) boundary


def _actor_critic_fused_kernel(state_ref, p_ref, out_ref, *, action_dim):
    x = state_ref[...]                                  # [TB, S] f32
    S = x.shape[-1]
    s_pad = p_ref.shape[0] - (2 * FUSED + _BIAS_ROWS)   # padded row count reserved for W1

    # static, sublane-aligned slices into the packed parameter slab (VMEM-resident)
    w1 = p_ref[0:S, :]                                  # [S, 128]   = [aw1 | cw1]
    w2 = p_ref[s_pad:s_pad + FUSED, :]                  # [128, 128] = blkdiag(aw2, cw2)
    w3 = p_ref[s_pad + FUSED:s_pad + 2 * FUSED, :]      # [128, 128] = fused head
    br = s_pad + 2 * FUSED
    b1 = p_ref[br:br + 1, :]                            # [1, 128]
    b2 = p_ref[br + 8:br + 9, :]
    b3 = p_ref[br + 16:br + 17, :]

    # three lane-dense matmuls cover both heads
    h = jnp.tanh(jnp.dot(x, w1, preferred_element_type=jnp.float32) + b1)
    h = jnp.tanh(jnp.dot(h, w2, preferred_element_type=jnp.float32) + b2)
    head = jnp.dot(h, w3, preferred_element_type=jnp.float32) + b3   # [TB, 128]
    # head cols [0, A) = actor logits, col A = critic value, cols > A = exact 0

    # softmax over the actor columns only, on the already-resident fused vreg
    col = jax.lax.broadcasted_iota(jnp.int32, head.shape, 1)
    actor_mask = col < action_dim
    m = jnp.max(jnp.where(actor_mask, head, -jnp.inf), axis=-1, keepdims=True)
    e = jnp.where(actor_mask, jnp.exp(head - m), 0.0)
    denom = jnp.sum(e, axis=-1, keepdims=True)
    probs = e / denom                                   # exact normalization (sum(probs) == 1)

    # single lane-dense write: probs in actor lanes, critic value (and zero pad) elsewhere
    out_ref[...] = jnp.where(actor_mask, probs, head)


def pack_params(p, state_dim, action_dim):
    """Pack all 12 weights/biases into one [s_pad + 2*128 + 24, 128] f32 slab."""
    assert action_dim + 1 <= FUSED, "action_dim must be <= 127 for the fused head"
    s_pad = ((state_dim + 7) // 8) * 8
    slab = jnp.zeros((s_pad + 2 * FUSED + _BIAS_ROWS, FUSED), jnp.float32)

    # layer 1: [aw1 | cw1]
    slab = slab.at[:state_dim, :HIDDEN].set(p["aw1"])
    slab = slab.at[:state_dim, HIDDEN:].set(p["cw1"])
    # layer 2: block-diagonal(aw2, cw2)
    r = s_pad
    slab = slab.at[r:r + HIDDEN, :HIDDEN].set(p["aw2"])
    slab = slab.at[r + HIDDEN:r + FUSED, HIDDEN:].set(p["cw2"])
    # layer 3: actor head -> cols [0, A); critic head -> col A
    r = s_pad + FUSED
    slab = slab.at[r:r + HIDDEN, :action_dim].set(p["aw3"])
    slab = slab.at[r + HIDDEN:r + FUSED, action_dim:action_dim + 1].set(p["cw3"])
    # fused biases, each on its own 8-row boundary
    r = s_pad + 2 * FUSED
    slab = slab.at[r, :HIDDEN].set(p["ab1"][0])
    slab = slab.at[r, HIDDEN:].set(p["cb1"][0])
    slab = slab.at[r + 8, :HIDDEN].set(p["ab2"][0])
    slab = slab.at[r + 8, HIDDEN:].set(p["cb2"][0])
    slab = slab.at[r + 16, :action_dim].set(p["ab3"][0])
    slab = slab.at[r + 16, action_dim].set(p["cb3"][0, 0])
    return slab


def actor_critic_forward(state, packed_params, action_dim, *, batch_tile=512):
    """state: [B, state_dim] f32; packed_params: slab from pack_params.

    Returns (action_probs [B, action_dim], state_values [B, 1]).
    """
    B, S = state.shape
    TB = min(B, batch_tile)          # <=512 rows: safe for v7x's 64 MiB VMEM
    grid = (pl.cdiv(B, TB),)

    kernel = functools.partial(_actor_critic_fused_kernel, action_dim=action_dim)

    out = pl.pallas_call(
        kernel,
        out_shape=jax.ShapeDtypeStruct((B, OUT_W), jnp.float32),
        grid=grid,
        in_specs=[
            pl.BlockSpec((TB, S), lambda i: (i, 0)),                 # state tiles pipeline
            pl.BlockSpec(packed_params.shape, lambda i: (0, 0)),     # weights stay resident
        ],
        out_specs=pl.BlockSpec((TB, OUT_W), lambda i: (i, 0)),       # lane-dense output slab
        compiler_params=pltpu.CompilerParams(
            dimension_semantics=("parallel",),                       # 2x on v7x (2 TCs/chip)
        ),
    )(state, packed_params)

    probs = out[:, :action_dim]
    values = out[:, action_dim:action_dim + 1]
    return probs, values


def init_params(key, state_dim, action_dim):
    """PyTorch-style uniform init; weights stored as [in, out]."""
    def linear(key, fan_in, fan_out):
        kw, kb = jax.random.split(key)
        bound = 1.0 / jnp.sqrt(fan_in)
        w = jax.random.uniform(kw, (fan_in, fan_out), jnp.float32, -bound, bound)
        b = jax.random.uniform(kb, (1, fan_out), jnp.float32, -bound, bound)
        return w, b

    keys = jax.random.split(key, 6)
    aw1, ab1 = linear(keys[0], state_dim, HIDDEN)
    aw2, ab2 = linear(keys[1], HIDDEN, HIDDEN)
    aw3, ab3 = linear(keys[2], HIDDEN, action_dim)
    cw1, cb1 = linear(keys[3], state_dim, HIDDEN)
    cw2, cb2 = linear(keys[4], HIDDEN, HIDDEN)
    cw3, cb3 = linear(keys[5], HIDDEN, 1)
    return dict(
        aw1=aw1, ab1=ab1, aw2=aw2, ab2=ab2, aw3=aw3, ab3=ab3,
        cw1=cw1, cb1=cb1, cw2=cw2, cb2=cb2, cw3=cw3, cb3=cb3,
    )


def reference_forward(state, p):
    h = jnp.tanh(state @ p["aw1"] + p["ab1"])
    h = jnp.tanh(h @ p["aw2"] + p["ab2"])
    logits = h @ p["aw3"] + p["ab3"]
    probs = jax.nn.softmax(logits, axis=-1)
    c = jnp.tanh(state @ p["cw1"] + p["cb1"])
    c = jnp.tanh(c @ p["cw2"] + p["cb2"])
    values = c @ p["cw3"] + p["cb3"]
    return probs, values


if __name__ == "__main__":
    B, STATE_DIM, ACTION_DIM = 8, 16, 4

    key = jax.random.PRNGKey(0)
    k_state, k_params = jax.random.split(key)
    state = jax.random.normal(k_state, (B, STATE_DIM), jnp.float32)
    params = init_params(k_params, STATE_DIM, ACTION_DIM)
    slab = pack_params(params, STATE_DIM, ACTION_DIM)

    probs, values = actor_critic_forward(state, slab, ACTION_DIM)
    probs = jax.block_until_ready(probs)
    values = jax.block_until_ready(values)

    ref_probs, ref_values = reference_forward(state, params)
    assert probs.shape == (B, ACTION_DIM) and values.shape == (B, 1)
    assert jnp.allclose(probs, ref_probs, atol=5e-4, rtol=5e-4)
    assert jnp.allclose(values, ref_values, atol=1e-4, rtol=1e-4)
    assert jnp.allclose(jnp.sum(probs, axis=-1), 1.0, atol=1e-4)

    print("KERNEL_OK")
</pallas_src>

<mosaic_0001>
module attributes {stable_mosaic.version = 11 : i64} {
  func.func @_actor_critic_fused_kernel(%arg0: i32, %arg1: memref<8x16xf32, #tpu.memory_space<vmem>>, %arg2: memref<296x128xf32, #tpu.memory_space<vmem>>, %arg3: memref<8x128xf32, #tpu.memory_space<vmem>>) attributes {dimension_semantics = [#tpu.dimension_semantics<parallel>], iteration_bounds = array<i64: 1>, scalar_prefetch = 0 : i64, scratch_operands = 0 : i64, tpu.core_type = #tpu.core_type<tc>, window_params = [{transform_indices = @transform_0, window_bounds = array<i64: 8, 16>}, {pipeline_mode = #tpu.pipeline_mode<synchronous>, transform_indices = @transform_1, window_bounds = array<i64: 296, 128>}, {transform_indices = @transform_2, window_bounds = array<i64: 8, 128>}]} {
    %c0 = arith.constant 0 : index
    %c0_0 = arith.constant 0 : index
    %0 = vector.load %arg1[%c0, %c0_0] : memref<8x16xf32, #tpu.memory_space<vmem>>, vector<8x16xf32>
    %c0_1 = arith.constant 0 : index
    %c0_2 = arith.constant 0 : index
    %1 = vector.load %arg2[%c0_1, %c0_2] : memref<296x128xf32, #tpu.memory_space<vmem>>, vector<16x128xf32>
    %c16 = arith.constant 16 : index
    %c0_3 = arith.constant 0 : index
    %2 = vector.load %arg2[%c16, %c0_3] : memref<296x128xf32, #tpu.memory_space<vmem>>, vector<128x128xf32>
    %c144 = arith.constant 144 : index
    %c0_4 = arith.constant 0 : index
    %3 = vector.load %arg2[%c144, %c0_4] : memref<296x128xf32, #tpu.memory_space<vmem>>, vector<128x128xf32>
    %c272 = arith.constant 272 : index
    %c0_5 = arith.constant 0 : index
    %4 = vector.load %arg2[%c272, %c0_5] : memref<296x128xf32, #tpu.memory_space<vmem>>, vector<1x128xf32>
    %c280 = arith.constant 280 : index
    %c0_6 = arith.constant 0 : index
    %5 = vector.load %arg2[%c280, %c0_6] : memref<296x128xf32, #tpu.memory_space<vmem>>, vector<1x128xf32>
    %c288 = arith.constant 288 : index
    %c0_7 = arith.constant 0 : index
    %6 = vector.load %arg2[%c288, %c0_7] : memref<296x128xf32, #tpu.memory_space<vmem>>, vector<1x128xf32>
    %cst = arith.constant dense<0.000000e+00> : vector<8x128xf32>
    %7 = tpu.matmul %0, %1, %cst {dimension_numbers = #tpu.dot_dimension_numbers<[1], [0], [0], [1], [0, 0, 1, 1], [], []>} : vector<8x16xf32>, vector<16x128xf32>, vector<8x128xf32> -> vector<8x128xf32>
    %8 = vector.broadcast %4 : vector<1x128xf32> to vector<8x128xf32>
    %9 = arith.addf %7, %8 : vector<8x128xf32>
    %10 = math.tanh %9 : vector<8x128xf32>
    %cst_8 = arith.constant dense<0.000000e+00> : vector<8x128xf32>
    %11 = tpu.matmul %10, %2, %cst_8 {dimension_numbers = #tpu.dot_dimension_numbers<[1], [0], [0], [1], [0, 0, 1, 1], [], []>} : vector<8x128xf32>, vector<128x128xf32>, vector<8x128xf32> -> vector<8x128xf32>
    %12 = vector.broadcast %5 : vector<1x128xf32> to vector<8x128xf32>
    %13 = arith.addf %11, %12 : vector<8x128xf32>
    %14 = math.tanh %13 : vector<8x128xf32>
    %cst_9 = arith.constant dense<0.000000e+00> : vector<8x128xf32>
    %15 = tpu.matmul %14, %3, %cst_9 {dimension_numbers = #tpu.dot_dimension_numbers<[1], [0], [0], [1], [0, 0, 1, 1], [], []>} : vector<8x128xf32>, vector<128x128xf32>, vector<8x128xf32> -> vector<8x128xf32>
    %16 = vector.broadcast %6 : vector<1x128xf32> to vector<8x128xf32>
    %17 = arith.addf %15, %16 : vector<8x128xf32>
    %18 = tpu.iota {dimensions = array<i32: 1>} : vector<8x128xi32>
    %c4_i32 = arith.constant 4 : i32
    %19 = vector.broadcast %c4_i32 : i32 to vector<8x128xi32>
    %20 = arith.cmpi slt, %18, %19 : vector<8x128xi32>
    %cst_10 = arith.constant 0xFF800000 : f32
    %21 = vector.broadcast %cst_10 : f32 to vector<8x128xf32>
    %22 = arith.select %20, %17, %21 : vector<8x128xi1>, vector<8x128xf32>
    %cst_11 = arith.constant dense<0xFF800000> : vector<8xf32>
    %23 = vector.multi_reduction <maximumf>, %22, %cst_11 [1] : vector<8x128xf32> to vector<8xf32>
    %24 = vector.shape_cast %23 : vector<8xf32> to vector<8x1xf32>
    %25 = vector.broadcast %24 : vector<8x1xf32> to vector<8x128xf32>
    %26 = arith.subf %17, %25 : vector<8x128xf32>
    %27 = math.exp %26 : vector<8x128xf32>
    %cst_12 = arith.constant 0.000000e+00 : f32
    %28 = vector.broadcast %cst_12 : f32 to vector<8x128xf32>
    %29 = arith.select %20, %27, %28 : vector<8x128xi1>, vector<8x128xf32>
    %cst_13 = arith.constant dense<0.000000e+00> : vector<8xf32>
    %30 = vector.multi_reduction <add>, %29, %cst_13 [1] : vector<8x128xf32> to vector<8xf32>
    %31 = vector.shape_cast %30 : vector<8xf32> to vector<8x1xf32>
    %32 = vector.broadcast %31 : vector<8x1xf32> to vector<8x128xf32>
    %33 = arith.divf %29, %32 : vector<8x128xf32>
    %34 = arith.select %20, %33, %17 : vector<8x128xi1>, vector<8x128xf32>
    %c0_14 = arith.constant 0 : index
    %c0_15 = arith.constant 0 : index
    %35 = vector.load %arg3[%c0_14, %c0_15] : memref<8x128xf32, #tpu.memory_space<vmem>>, vector<8x128xf32>
    tpu.vector_store %arg3[%c0_14, %c0_15], %34 {strides = array<i32>} : memref<8x128xf32, #tpu.memory_space<vmem>>, vector<8x128xf32>,
    return
  }
  func.func @transform_0(%arg0: i32) -> (i32, i32) {
    %c0_i32 = arith.constant 0 : i32
    %c0_i32_0 = arith.constant 0 : i32
    return %arg0, %c0_i32 : i32, i32
  }
  func.func @transform_1(%arg0: i32) -> (i32, i32) {
    %c0_i32 = arith.constant 0 : i32
    %c0_i32_0 = arith.constant 0 : i32
    %c0_i32_1 = arith.constant 0 : i32
    return %c0_i32, %c0_i32_0 : i32, i32
  }
  func.func @transform_2(%arg0: i32) -> (i32, i32) {
    %c0_i32 = arith.constant 0 : i32
    %c0_i32_0 = arith.constant 0 : i32
    return %arg0, %c0_i32 : i32, i32
  }
}

</mosaic_0001>

<llo_original>
// kernel: tpu_custom_call.1
$region0: #{tpu_custom_call.1}
  #allocation0 [shape = 'u32[]', space=smem, size = 0x4, offset = 0x4, fixed_abs, tag = 'smem constant byte address 0x4 - core index']
  #allocation1 [shape = 'u32[144,128]{1,0:T(1,128)}', space=vmem, size = 0x12000, scoped, tag = 'internal scratch']
  %s0 = inlined_call_operand.hbm [shape: f32[8,16], index: 0, kind: input, shape index: {}]
  %s1 = inlined_call_operand.hbm [shape: f32[296,128], index: 1, kind: input, shape index: {}]
  %s2 = inlined_call_operand.hbm [shape: f32[8,128], index: 2, kind: output, shape index: {}]
  %s3 = sld [smem:[#allocation0]]
  $region26: #{tpu_custom_call.1} parent=0
    _
  %s5 = ssub.s32 1, %s3
  %s6 = scalar_select 0, %s5, %s3
  $region1: #{tpu_custom_call.1} parent=0
    #allocation2 [shape = 'u8[4096]{0}', space=vmem, size = 0x1000, scoped, tag = 'input window, operand 0, single buffered']
    #allocation3 [shape = 's32[1]{0}', space=sflag, size = 0x4, scoped, tag = 'scoped memory for tpu_custom_call.1']
    #allocation4 [shape = 's32[1]{0}', space=sflag, size = 0x4, scoped, tag = 'scoped memory for tpu_custom_call.1']
    #allocation5 [shape = 'u8[151552]{0}', space=vmem, size = 0x25000, scoped, tag = 'input window, operand 1, single buffered']
    #allocation6 [shape = 's32[1]{0}', space=sflag, size = 0x4, scoped, tag = 'scoped memory for tpu_custom_call.1']
    #allocation7 [shape = 'u8[4096]{0}', space=vmem, size = 0x1000, scoped, tag = 'output window, operand 0, single buffered']
    %7 = vsyncpa [#allocation3], 0
    %8 = vsyncpa [#allocation6], 0
    %9 = vsyncpa [#allocation4], 0
    // Predicated region
    $region2: #{tpu_custom_call.1} parent=1 // pred_check
      _
    $region3: #{tpu_custom_call.1} parent=1 // pred_check_branch
      %11 = sbr.rel (0) target = $region5
    $region4: #{tpu_custom_call.1} parent=1 // pred_region
      %s13 = ssub.s32 128, 128
      %14 = vsyncadd [#allocation3], %s13
      %s16 = sshll.u32 [#allocation2], 4
      %s17 = int_to_ptr.vmem [resolvable:$true] %s16
      %19 = dma.hbm_to_vmem [thread:$0]  %s0, 128, %s17, [#allocation3]
    $region5: #{tpu_custom_call.1} parent=1 // pred_fallthru
      _
    // Predicated region
    $region6: #{tpu_custom_call.1} parent=1 // pred_check
      _
    $region7: #{tpu_custom_call.1} parent=1 // pred_check_branch
      %21 = sbr.rel (0) target = $region9
    $region8: #{tpu_custom_call.1} parent=1 // pred_region
      %s23 = ssub.s32 4736, 4736
      %24 = vsyncadd [#allocation6], %s23
      %s25 = sshll.u32 [#allocation5], 4
      %s26 = int_to_ptr.vmem [resolvable:$true] %s25
      %31 = dma.hbm_to_vmem [thread:$0]  %s1, 4736, %s26, [#allocation6], 128, 128, 8
    $region9: #{tpu_custom_call.1} parent=1 // pred_fallthru
      _
    // Predicated region
    $region10: #{tpu_custom_call.1} parent=1 // pred_check
      _
    $region11: #{tpu_custom_call.1} parent=1 // pred_check_branch
      %33 = sbr.rel (0) target = $region13
    $region12: #{tpu_custom_call.1} parent=1 // pred_region
      %34 = dma.done [#allocation3], 128
    $region13: #{tpu_custom_call.1} parent=1 // pred_fallthru
      _
    // Predicated region
    $region14: #{tpu_custom_call.1} parent=1 // pred_check
      _
    $region15: #{tpu_custom_call.1} parent=1 // pred_check_branch
      %36 = sbr.rel (0) target = $region17
    $region16: #{tpu_custom_call.1} parent=1 // pred_region
      %37 = dma.done [#allocation6], 4736
    $region17: #{tpu_custom_call.1} parent=1 // pred_fallthru
      _
    %v38 = vld [vmem:[#allocation2] sm:$0xff]
    %v39 = vld [vmem:[#allocation5] sm:$0xff]
    %v40 = vld [vmem:[#allocation5 + $0x8] sm:$0xff]
    %v41 = vld [vmem:[#allocation5 + $0x10] sm:$0xff]
    %v42 = vld [vmem:[#allocation5 + $0x18] sm:$0xff]
    %v43 = vld [vmem:[#allocation5 + $0x20] sm:$0xff]
    %v44 = vld [vmem:[#allocation5 + $0x28] sm:$0xff]
    %v45 = vld [vmem:[#allocation5 + $0x30] sm:$0xff]
    %v46 = vld [vmem:[#allocation5 + $0x38] sm:$0xff]
    %v47 = vld [vmem:[#allocation5 + $0x40] sm:$0xff]
    %v48 = vld [vmem:[#allocation5 + $0x48] sm:$0xff]
    %v49 = vld [vmem:[#allocation5 + $0x50] sm:$0xff]
    %v50 = vld [vmem:[#allocation5 + $0x58] sm:$0xff]
    %v51 = vld [vmem:[#allocation5 + $0x60] sm:$0xff]
    %v52 = vld [vmem:[#allocation5 + $0x68] sm:$0xff]
    %v53 = vld [vmem:[#allocation5 + $0x70] sm:$0xff]
    %v54 = vld [vmem:[#allocation5 + $0x78] sm:$0xff]
    %v55 = vld [vmem:[#allocation5 + $0x80] sm:$0xff]
    %v56 = vld [vmem:[#allocation5 + $0x88] sm:$0xff]
    %v57 = vld [vmem:[#allocation5 + $0x90] sm:$0xff]
    %v58 = vld [vmem:[#allocation5 + $0x98] sm:$0xff]
    %v59 = vld [vmem:[#allocation5 + $0xa0] sm:$0xff]
    %v60 = vld [vmem:[#allocation5 + $0xa8] sm:$0xff]
    %v61 = vld [vmem:[#allocation5 + $0xb0] sm:$0xff]
    %v62 = vld [vmem:[#allocation5 + $0xb8] sm:$0xff]
    %v63 = vld [vmem:[#allocation5 + $0xc0] sm:$0xff]
    %v64 = vld [vmem:[#allocation5 + $0xc8] sm:$0xff]
    %v65 = vld [vmem:[#allocation5 + $0xd0] sm:$0xff]
    %v66 = vld [vmem:[#allocation5 + $0xd8] sm:$0xff]
    %v67 = vld [vmem:[#allocation5 + $0xe0] sm:$0xff]
    %v68 = vld [vmem:[#allocation5 + $0xe8] sm:$0xff]
    %v69 = vld [vmem:[#allocation5 + $0xf0] sm:$0xff]
    %v70 = vld [vmem:[#allocation5 + $0xf8] sm:$0xff]
    %v71 = vld [vmem:[#allocation5 + $0x100] sm:$0xff]
    %v72 = vld [vmem:[#allocation5 + $0x108] sm:$0xff]
    %v73 = vld [vmem:[#allocation5 + $0x110] sm:$0x1]
    %v74 = vld [vmem:[#allocation5 + $0x118] sm:$0x1]
    %v75 = vld [vmem:[#allocation5 + $0x120] sm:$0x1]
    %v76 = vlaneseq
    %v77 = vshrl.u32 %v76, 7
    %v78 = vsub.s32 0, %v77
    %v79 = vrot.slane %v73, %v78
    %vm80 = vcmask 130048
    %v82 = vsel %vm80, %v38, 0
    %84 = vmatprep.subr.mxu0 0.0
    %85 = vmatpush1.msra.mxu0 %v39
    %86 = vmatprep.subr.mxu0 0.0
    %87 = vmatpush1.msra.mxu0 %v40
    %88 = vmatprep.subr.mxu0 0.0
    %89 = vmatpush1.msra.mxu0 0.0
    %90 = vmatprep.subr.mxu0 0.0
    %91 = vmatpush1.msra.mxu0 0.0
    %92 = vmatprep.subr.mxu0 0.0
    %93 = vmatpush1.msra.mxu0 0.0
    %94 = vmatprep.subr.mxu0 0.0
    %95 = vmatpush1.msra.mxu0 0.0
    %96 = vmatprep.subr.mxu0 0.0
    %97 = vmatpush1.msra.mxu0 0.0
    %98 = vmatprep.subr.mxu0 0.0
    %99 = vmatpush1.msra.mxu0 0.0
    %100 = vmatprep.subr.mxu0 0.0
    %101 = vmatpush1.msra.mxu0 0.0
    %102 = vmatprep.subr.mxu0 0.0
    %103 = vmatpush1.msra.mxu0 0.0
    %104 = vmatprep.subr.mxu0 0.0
    %105 = vmatpush1.msra.mxu0 0.0
    %106 = vmatprep.subr.mxu0 0.0
    %107 = vmatpush1.msra.mxu0 0.0
    %108 = vmatprep.subr.mxu0 0.0
    %109 = vmatpush1.msra.mxu0 0.0
    %110 = vmatprep.subr.mxu0 0.0
    %111 = vmatpush1.msra.mxu0 0.0
    %112 = vmatprep.subr.mxu0 0.0
    %113 = vmatpush1.msra.mxu0 0.0
    %114 = vmatprep.subr.mxu0 0.0
    %115 = vmatpush1.msra.mxu0 0.0
    %116 = vmatprep.subr.mxu0 0.0
    %117 = vmatpush1.msra.mxu0 0.0
    %118 = vmatprep.subr.mxu0 0.0
    %119 = vmatpush1.msra.mxu0 0.0
    %120 = vmatprep.subr.mxu0 0.0
    %121 = vmatpush1.msra.mxu0 0.0
    %122 = vmatprep.subr.mxu0 0.0
    %123 = vmatpush1.msra.mxu0 0.0
    %124 = vmatprep.subr.mxu0 0.0
    %125 = vmatpush1.msra.mxu0 0.0
    %126 = vmatprep.subr.mxu0 0.0
    %127 = vmatpush1.msra.mxu0 0.0
    %128 = vmatprep.subr.mxu0 0.0
    %129 = vmatpush1.msra.mxu0 0.0
    %130 = vmatprep.subr.mxu0 0.0
    %131 = vmatpush1.msra.mxu0 0.0
    %132 = vmatprep.subr.mxu0 0.0
    %133 = vmatpush1.msra.mxu0 0.0
    %134 = vmatprep.subr.mxu0 0.0
    %135 = vmatpush1.msra.mxu0 0.0
    %136 = vmatprep.subr.mxu0 0.0
    %137 = vmatpush1.msra.mxu0 0.0
    %138 = vmatprep.subr.mxu0 0.0
    %139 = vmatpush1.msra.mxu0 0.0
    %140 = vmatprep.subr.mxu0 0.0
    %141 = vmatpush1.msra.mxu0 0.0
    %142 = vmatprep.subr.mxu0 0.0
    %143 = vmatpush1.msra.mxu0 0.0
    %144 = vmatprep.subr.mxu0 0.0
    %145 = vmatpush1.msra.mxu0 0.0
    %146 = vmatprep.subr.mxu0 0.0
    %147 = vmatpush1.msra.mxu0 0.0
    %148 = vmatprep.mubr.f32.mxu0 0.0
    %149 = vmatmul.mubr.f32.gmra.mrb[0].mxu0 %v82
    %v150 = vpop.f32.mrb[0].mxu0
    %v151 = vadd.f32 %v79, %v150
    %v152 = vpop.f32.mrb[0].mxu0
    %153 = vdwg.mxu0
    %v154 = vtanh.pop %v151
    %v155 = vlaneseq
    %v156 = vshrl.u32 %v155, 7
    %v157 = vsub.s32 0, %v156
    %v158 = vrot.slane %v74, %v157
    %159 = vmatprep.subr.mxu0 0.0
    %160 = vmatpush1.msra.mxu0 %v41
    %161 = vmatprep.subr.mxu0 0.0
    %162 = vmatpush1.msra.mxu0 %v42
    %163 = vmatprep.subr.mxu0 0.0
    %164 = vmatpush1.msra.mxu0 %v43
    %165 = vmatprep.subr.mxu0 0.0
    %166 = vmatpush1.msra.mxu0 %v44
    %167 = vmatprep.subr.mxu0 0.0
    %168 = vmatpush1.msra.mxu0 %v45
    %169 = vmatprep.subr.mxu0 0.0
    %170 = vmatpush1.msra.mxu0 %v46
    %171 = vmatprep.subr.mxu0 0.0
    %172 = vmatpush1.msra.mxu0 %v47
    %173 = vmatprep.subr.mxu0 0.0
    %174 = vmatpush1.msra.mxu0 %v48
    %175 = vmatprep.subr.mxu0 0.0
    %176 = vmatpush1.msra.mxu0 %v49
    %177 = vmatprep.subr.mxu0 0.0
    %178 = vmatpush1.msra.mxu0 %v50
    %179 = vmatprep.subr.mxu0 0.0
    %180 = vmatpush1.msra.mxu0 %v51
    %181 = vmatprep.subr.mxu0 0.0
    %182 = vmatpush1.msra.mxu0 %v52
    %183 = vmatprep.subr.mxu0 0.0
    %184 = vmatpush1.msra.mxu0 %v53
    %185 = vmatprep.subr.mxu0 0.0
    %186 = vmatpush1.msra.mxu0 %v54
    %187 = vmatprep.subr.mxu0 0.0
    %188 = vmatpush1.msra.mxu0 %v55
    %189 = vmatprep.subr.mxu0 0.0
    %190 = vmatpush1.msra.mxu0 %v56
    %191 = vmatprep.subr.mxu0 0.0
    %192 = vmatpush1.msra.mxu0 0.0
    %193 = vmatprep.subr.mxu0 0.0
    %194 = vmatpush1.msra.mxu0 0.0
    %195 = vmatprep.subr.mxu0 0.0
    %196 = vmatpush1.msra.mxu0 0.0
    %197 = vmatprep.subr.mxu0 0.0
    %198 = vmatpush1.msra.mxu0 0.0
    %199 = vmatprep.subr.mxu0 0.0
    %200 = vmatpush1.msra.mxu0 0.0
    %201 = vmatprep.subr.mxu0 0.0
    %202 = vmatpush1.msra.mxu0 0.0
    %203 = vmatprep.subr.mxu0 0.0
    %204 = vmatpush1.msra.mxu0 0.0
    %205 = vmatprep.subr.mxu0 0.0
    %206 = vmatpush1.msra.mxu0 0.0
    %207 = vmatprep.subr.mxu0 0.0
    %208 = vmatpush1.msra.mxu0 0.0
    %209 = vmatprep.subr.mxu0 0.0
    %210 = vmatpush1.msra.mxu0 0.0
    %211 = vmatprep.subr.mxu0 0.0
    %212 = vmatpush1.msra.mxu0 0.0
    %213 = vmatprep.subr.mxu0 0.0
    %214 = vmatpush1.msra.mxu0 0.0
    %215 = vmatprep.subr.mxu0 0.0
    %216 = vmatpush1.msra.mxu0 0.0
    %217 = vmatprep.subr.mxu0 0.0
    %218 = vmatpush1.msra.mxu0 0.0
    %219 = vmatprep.subr.mxu0 0.0
    %220 = vmatpush1.msra.mxu0 0.0
    %221 = vmatprep.subr.mxu0 0.0
    %222 = vmatpush1.msra.mxu0 0.0
    %223 = vmatprep.mubr.f32.mxu0 0.0
    %224 = vmatmul.mubr.f32.gmra.mrb[0].mxu0 %v154
    %v225 = vpop.f32.mrb[0].mxu0
    %v226 = vadd.f32 %v158, %v225
    %v227 = vpop.f32.mrb[0].mxu0
    %228 = vdwg.mxu0
    %v229 = vtanh.pop %v226
    %v230 = vlaneseq
    %v231 = vshrl.u32 %v230, 7
    %v232 = vsub.s32 0, %v231
    %v233 = vrot.slane %v75, %v232
    %234 = vmatprep.subr.mxu0 0.0
    %235 = vmatpush1.msra.mxu0 %v57
    %236 = vmatprep.subr.mxu0 0.0
    %237 = vmatpush1.msra.mxu0 %v58
    %238 = vmatprep.subr.mxu0 0.0
    %239 = vmatpush1.msra.mxu0 %v59
    %240 = vmatprep.subr.mxu0 0.0
    %241 = vmatpush1.msra.mxu0 %v60
    %242 = vmatprep.subr.mxu0 0.0
    %243 = vmatpush1.msra.mxu0 %v61
    %244 = vmatprep.subr.mxu0 0.0
    %245 = vmatpush1.msra.mxu0 %v62
    %246 = vmatprep.subr.mxu0 0.0
    %247 = vmatpush1.msra.mxu0 %v63
    %248 = vmatprep.subr.mxu0 0.0
    %249 = vmatpush1.msra.mxu0 %v64
    %250 = vmatprep.subr.mxu0 0.0
    %251 = vmatpush1.msra.mxu0 %v65
    %252 = vmatprep.subr.mxu0 0.0
    %253 = vmatpush1.msra.mxu0 %v66
    %254 = vmatprep.subr.mxu0 0.0
    %255 = vmatpush1.msra.mxu0 %v67
    %256 = vmatprep.subr.mxu0 0.0
    %257 = vmatpush1.msra.mxu0 %v68
    %258 = vmatprep.subr.mxu0 0.0
    %259 = vmatpush1.msra.mxu0 %v69
    %260 = vmatprep.subr.mxu0 0.0
    %261 = vmatpush1.msra.mxu0 %v70
    %262 = vmatprep.subr.mxu0 0.0
    %263 = vmatpush1.msra.mxu0 %v71
    %264 = vmatprep.subr.mxu0 0.0
    %265 = vmatpush1.msra.mxu0 %v72
    %266 = vmatprep.subr.mxu0 0.0
    %267 = vmatpush1.msra.mxu0 0.0
    %268 = vmatprep.subr.mxu0 0.0
    %269 = vmatpush1.msra.mxu0 0.0
    %270 = vmatprep.subr.mxu0 0.0
    %271 = vmatpush1.msra.mxu0 0.0
    %272 = vmatprep.subr.mxu0 0.0
    %273 = vmatpush1.msra.mxu0 0.0
    %274 = vmatprep.subr.mxu0 0.0
    %275 = vmatpush1.msra.mxu0 0.0
    %276 = vmatprep.subr.mxu0 0.0
    %277 = vmatpush1.msra.mxu0 0.0
    %278 = vmatprep.subr.mxu0 0.0
    %279 = vmatpush1.msra.mxu0 0.0
    %280 = vmatprep.subr.mxu0 0.0
    %281 = vmatpush1.msra.mxu0 0.0
    %282 = vmatprep.subr.mxu0 0.0
    %283 = vmatpush1.msra.mxu0 0.0
    %284 = vmatprep.subr.mxu0 0.0
    %285 = vmatpush1.msra.mxu0 0.0
    %286 = vmatprep.subr.mxu0 0.0
    %287 = vmatpush1.msra.mxu0 0.0
    %288 = vmatprep.subr.mxu0 0.0
    %289 = vmatpush1.msra.mxu0 0.0
    %290 = vmatprep.subr.mxu0 0.0
    %291 = vmatpush1.msra.mxu0 0.0
    %292 = vmatprep.subr.mxu0 0.0
    %293 = vmatpush1.msra.mxu0 0.0
    %294 = vmatprep.subr.mxu0 0.0
    %295 = vmatpush1.msra.mxu0 0.0
    %296 = vmatprep.subr.mxu0 0.0
    %297 = vmatpush1.msra.mxu0 0.0
    %298 = vmatprep.mubr.f32.mxu0 0.0
    %299 = vmatmul.mubr.f32.gmra.mrb[0].mxu0 %v229
    %v300 = vpop.f32.mrb[0].mxu0
    %v301 = vadd.f32 %v233, %v300
    %v302 = vpop.f32.mrb[0].mxu0
    %303 = vdwg.mxu0
    %v304 = vlaneseq
    %v305 = vand.u32 %v304, 127
    %vm306 = vcmp.lt.s32.totalorder %v305, 4
    %v307 = vsel %vm306, %v301, -inf
    %308 = vmax.xlane.f32.xlu0 %v307
    %v309 = vpop.xlane.xlu0 %308
    %v310 = vsub.f32 %v301, %v309
    %v311 = vmul.f32 %v310, 1.442695
    %v312 = vpow.pop %v311
    %v313 = vsel %vm306, %v312, 0.0
    %314 = vadd.xlane.f32.xlu0 %v313
    %v315 = vpop.xlane.xlu0 %314
    %v316 = vrcp.pop %v315
    %v317 = vmul.f32 %v313, %v316
    %v318 = vsel %vm306, %v317, %v301
    %319 = vst [vmem:[#allocation7] sm:$0xff] %v318
    // Predicated region
    $region18: #{tpu_custom_call.1} parent=1 // pred_check
      _
    $region19: #{tpu_custom_call.1} parent=1 // pred_check_branch
      %321 = sbr.rel (0) target = $region21
    $region20: #{tpu_custom_call.1} parent=1 // pred_region
      %s323 = ssub.s32 128, 128
      %324 = vsyncadd [#allocation4], %s323
      %s326 = sshll.u32 [#allocation7], 4
      %s327 = int_to_ptr.vmem [resolvable:$true] %s326
      %329 = dma.vmem_to_hbm [thread:$0]  %s327, 128, %s2, [#allocation4]
    $region21: #{tpu_custom_call.1} parent=1 // pred_fallthru
      _
    // Predicated region
    $region22: #{tpu_custom_call.1} parent=1 // pred_check
      _
    $region23: #{tpu_custom_call.1} parent=1 // pred_check_branch
      %331 = sbr.rel (0) target = $region25
    $region24: #{tpu_custom_call.1} parent=1 // pred_region
      %332 = dma.done [#allocation4], 128
    $region25: #{tpu_custom_call.1} parent=1 // pred_fallthru
      _
    %333 = vsyncpa [#allocation3], 1
    %334 = vsyncpa [#allocation6], 1
    %335 = vsyncpa [#allocation4], 1

</llo_original>
